<compile_context>
chip_gen: v5e
topology: v5e:2x2
jax: 0.10.0
libtpu: 0.0.40
codegen_flags: <defaults>
</compile_context>

<pallas_src>
import jax
import jax.numpy as jnp
from jax.experimental import pallas as pl
from jax.experimental.pallas import tpu as pltpu

_MIB = 1024 * 1024


# ----------------------------------------------------------------------------
# Helpers
# ----------------------------------------------------------------------------
def _sublane_multiple(dtype) -> int:
    """Sublane packing multiple: 8 for 4-byte, 16 for 2-byte, 32 for 1-byte."""
    itemsize = jnp.dtype(dtype).itemsize
    return {4: 8, 2: 16, 1: 32}.get(itemsize, 8)


def _vmem_budget_bytes() -> int:
    """Generation-aware scoped-VMEM budget for the tiled copy.

    v7x has only 64 MiB physical VMEM per TensorCore -> target ~22 MiB of
    scoped scratch; v5e/v6e have 128 MiB -> 32 MiB is safe (this also overrides
    v5e's 16 MiB scoped *default*).
    """
    cap = None
    try:
        cap = getattr(pltpu.get_tpu_info(), "vmem_capacity_bytes", None)
    except Exception:
        cap = None
    if cap is not None and cap <= 64 * _MIB:
        return 22 * _MIB
    return 32 * _MIB


def _lane_dense_shape(shape):
    """Lane-dense (last dim multiple of 128) reshape target, or the original
    shape when no pad-free reshape exists (then stores are masked but correct)."""
    n, d = shape
    if d % 128 == 0:
        return (n, d)
    total = n * d
    if total % 128 == 0:
        return (total // 128, 128)
    return (n, d)


# ----------------------------------------------------------------------------
# Kernel bodies
# ----------------------------------------------------------------------------
def _fused_copy_kernel(u_ref, v_ref, ou_ref, ov_ref):
    # One row tile of each tensor per grid step; pure lane-dense pass-through.
    ou_ref[...] = u_ref[...]
    ov_ref[...] = v_ref[...]


def _dma_copy_kernel(u_hbm, v_hbm, ou_hbm, ov_hbm, sem):
    # Direct HBM->HBM DMA for both tensors, overlapped, no VMEM staging.
    cu = pltpu.make_async_copy(u_hbm, ou_hbm, sem.at[0])
    cv = pltpu.make_async_copy(v_hbm, ov_hbm, sem.at[1])
    cu.start()
    cv.start()
    cu.wait()
    cv.wait()


# ----------------------------------------------------------------------------
# Wrappers
# ----------------------------------------------------------------------------
def _dma_materialize(h_u, h_v):
    """Single pallas_call; two overlapped HBM->HBM DMAs.  Minimal-overhead
    materialized copy: no tiling, no VMEM round-trip, no budget concerns."""
    return pl.pallas_call(
        _dma_copy_kernel,
        out_shape=(jax.ShapeDtypeStruct(h_u.shape, h_u.dtype),
                   jax.ShapeDtypeStruct(h_v.shape, h_v.dtype)),
        in_specs=[pl.BlockSpec(memory_space=pl.ANY),
                  pl.BlockSpec(memory_space=pl.ANY)],
        out_specs=(pl.BlockSpec(memory_space=pl.ANY),
                   pl.BlockSpec(memory_space=pl.ANY)),
        scratch_shapes=[pltpu.SemaphoreType.DMA((2,))],
    )(h_u, h_v)


def _fused_tiled_copy(h_u, h_v, *, vmem_budget=None):
    """Fused, row-tiled, lane-dense VMEM copy of two 2-D arrays in ONE call."""
    assert h_u.ndim == 2 and h_v.ndim == 2
    budget = _vmem_budget_bytes() if vmem_budget is None else vmem_budget

    # Lane-dense views (pure row-major refold, no data movement).
    su, sv = _lane_dense_shape(h_u.shape), _lane_dense_shape(h_v.shape)
    u2, v2 = h_u.reshape(su), h_v.reshape(sv)
    (nu, wu), (nv, wv) = su, sv
    iu = jnp.dtype(h_u.dtype).itemsize
    iv = jnp.dtype(h_v.dtype).itemsize

    # Budget-derived row tile: (in + out) x double-buffering = 4 resident
    # copies of each row tile in scoped VMEM.
    bytes_per_row = wu * iu + wv * iv
    sub = max(_sublane_multiple(h_u.dtype), _sublane_multiple(h_v.dtype))
    tm = max(sub, (budget // (4 * bytes_per_row) // sub) * sub)
    tm_u, tm_v = min(tm, nu), min(tm, nv)

    ntu, ntv = pl.cdiv(nu, tm_u), pl.cdiv(nv, tm_v)
    n_steps = max(ntu, ntv)

    if ntu == ntv:
        u_map = lambda i: (i, 0)
        v_map = lambda i: (i, 0)
        semantics = ("parallel",)          # megacore split on v7x
    else:
        # Clamp the shorter tensor's block index: its last tile is rewritten
        # with identical data on the tail steps (idempotent).  Block indices
        # repeat -> mark the axis "arbitrary".
        u_map = lambda i: (jnp.minimum(i, ntu - 1), 0)
        v_map = lambda i: (jnp.minimum(i, ntv - 1), 0)
        semantics = ("arbitrary",)

    # Tie the scoped-VMEM request to what the chosen tiles actually need.
    need = 4 * (tm_u * wu * iu + tm_v * wv * iv)
    vmem_limit = max(need + need // 2, 8 * _MIB)

    out_u2, out_v2 = pl.pallas_call(
        _fused_copy_kernel,
        out_shape=(jax.ShapeDtypeStruct(su, h_u.dtype),
                   jax.ShapeDtypeStruct(sv, h_v.dtype)),
        grid=(n_steps,),
        in_specs=[pl.BlockSpec((tm_u, wu), u_map),
                  pl.BlockSpec((tm_v, wv), v_map)],
        out_specs=(pl.BlockSpec((tm_u, wu), u_map),
                   pl.BlockSpec((tm_v, wv), v_map)),
        compiler_params=pltpu.CompilerParams(
            dimension_semantics=semantics,
            vmem_limit_bytes=int(vmem_limit),
        ),
    )(u2, v2)
    return out_u2.reshape(h_u.shape), out_v2.reshape(h_v.shape)


def template_forward(x_u, x_v, a_u, a_v, d_u, d_v, h_u, h_v, *,
                     materialize=False, copy_mode="dma"):
    """Pallas implementation of Template.forward.

    The layer-free Template is the identity on (h_u, h_v); every other input
    is unused (kept for signature fidelity).  The default path does no work.
    materialize=True forces an explicit kernel boundary:
      copy_mode="dma"   -> one pallas_call, direct HBM->HBM DMAs (fastest).
      copy_mode="tiled" -> one fused, budget-sized, lane-dense VMEM copy.
    """
    del x_u, x_v, a_u, a_v, d_u, d_v  # unused by the empty-layer Template

    if not materialize:
        # Highest-value optimization: the identity needs zero memory traffic.
        return h_u, h_v

    if copy_mode == "dma":
        return _dma_materialize(h_u, h_v)
    if copy_mode == "tiled":
        return _fused_tiled_copy(h_u, h_v)
    raise ValueError(f"unknown copy_mode: {copy_mode!r}")


if __name__ == "__main__":
    # Small, deterministic shapes consistent with a GCMC-style setup.
    u_num, v_num = 8, 8
    in_dim, ins_dim, hid_dim, out_dim = 16, 16, 32, 8
    num_of_ratings = 5

    key = jax.random.PRNGKey(0)
    ks = jax.random.split(key, 12)

    # Node features / graph structure (unused by the layer-free Template).
    x_u = jax.random.normal(ks[0], (u_num, in_dim), dtype=jnp.float32)
    x_v = jax.random.normal(ks[1], (v_num, in_dim), dtype=jnp.float32)
    a_u = jax.random.normal(ks[2], (num_of_ratings, u_num, v_num), dtype=jnp.float32)
    a_v = jax.random.normal(ks[3], (num_of_ratings, v_num, u_num), dtype=jnp.float32)
    d_u = jax.random.normal(ks[4], (u_num,), dtype=jnp.float32)
    d_v = jax.random.normal(ks[5], (v_num,), dtype=jnp.float32)
    # Hidden states — these are what forward returns.
    h_u = jax.random.normal(ks[6], (u_num, hid_dim), dtype=jnp.float32)
    h_v = jax.random.normal(ks[7], (v_num, hid_dim), dtype=jnp.float32)

    # 1) Default (optimized) path: pure pass-through, no kernel, no copy.
    out_u, out_v = template_forward(x_u, x_v, a_u, a_v, d_u, d_v, h_u, h_v)
    jax.block_until_ready((out_u, out_v))
    assert out_u.shape == h_u.shape and out_u.dtype == h_u.dtype
    assert out_v.shape == h_v.shape and out_v.dtype == h_v.dtype
    assert jnp.array_equal(out_u, h_u) and jnp.array_equal(out_v, h_v)

    # 2) Explicit-kernel path, DMA mode (default): direct HBM->HBM copies.
    out_u2, out_v2 = template_forward(x_u, x_v, a_u, a_v, d_u, d_v, h_u, h_v,
                                      materialize=True)
    jax.block_until_ready((out_u2, out_v2))
    assert jnp.array_equal(out_u2, h_u) and jnp.array_equal(out_v2, h_v)

    # 3) Explicit-kernel path, tiled mode: exercises the lane-dense reshape
    #    (hid_dim=32 -> (rows*32/128, 128) slab) and the fused single call.
    out_u3, out_v3 = template_forward(x_u, x_v, a_u, a_v, d_u, d_v, h_u, h_v,
                                      materialize=True, copy_mode="tiled")
    jax.block_until_ready((out_u3, out_v3))
    assert jnp.array_equal(out_u3, h_u) and jnp.array_equal(out_v3, h_v)

    # 4) Unequal tile counts + partial last block + clamped index path:
    #    force multi-tile with a tiny VMEM budget override.
    hu_big = jax.random.normal(ks[8], (2568, 96), dtype=jnp.float32)   # -> (1926, 128)
    hv_big = jax.random.normal(ks[9], (512, 64), dtype=jnp.float32)    # -> (256, 128)
    ou_big, ov_big = _fused_tiled_copy(hu_big, hv_big, vmem_budget=1 * _MIB)
    jax.block_until_ready((ou_big, ov_big))
    assert jnp.array_equal(ou_big, hu_big) and jnp.array_equal(ov_big, hv_big)

    # 5) Wide hidden dim: budget-derived TM keeps the working set inside the
    #    scoped VMEM limit (previous version could OOM here).
    hu_wide = jax.random.normal(ks[10], (256, 2048), dtype=jnp.float32)
    hv_wide = jax.random.normal(ks[11], (256, 2048), dtype=jnp.float32)
    ou_w, ov_w = _fused_tiled_copy(hu_wide, hv_wide)
    jax.block_until_ready((ou_w, ov_w))
    assert jnp.array_equal(ou_w, hu_wide) and jnp.array_equal(ov_w, hv_wide)

    print("KERNEL_OK")
</pallas_src>

<mosaic_0001>
module attributes {stable_mosaic.version = 11 : i64} {
  func.func @_dma_copy_kernel(%arg0: memref<8x32xf32, #tpu.memory_space<any>>, %arg1: memref<8x32xf32, #tpu.memory_space<any>>, %arg2: memref<8x32xf32, #tpu.memory_space<any>>, %arg3: memref<8x32xf32, #tpu.memory_space<any>>, %arg4: memref<2x!tpu.dma_semaphore, #tpu.memory_space<semaphore_mem>>) attributes {dimension_semantics = [], scalar_prefetch = 0 : i64, scratch_operands = 1 : i64, tpu.core_type = #tpu.core_type<tc>} {
    %c0_i32 = arith.constant 0 : i32
    %0 = tpu.memref_slice %arg4[%c0_i32] : memref<2x!tpu.dma_semaphore, #tpu.memory_space<semaphore_mem>> -> memref<1x!tpu.dma_semaphore, #tpu.memory_space<semaphore_mem>>
    %1 = tpu.memref_squeeze %0 : memref<1x!tpu.dma_semaphore, #tpu.memory_space<semaphore_mem>> -> memref<!tpu.dma_semaphore, #tpu.memory_space<semaphore_mem>>
    tpu.enqueue_dma source(%arg0 : memref<8x32xf32, #tpu.memory_space<any>>) target(%arg2 : memref<8x32xf32, #tpu.memory_space<any>>) target_semaphore(%1 : memref<!tpu.dma_semaphore, #tpu.memory_space<semaphore_mem>>)
    %c1_i32 = arith.constant 1 : i32
    %2 = tpu.memref_slice %arg4[%c1_i32] : memref<2x!tpu.dma_semaphore, #tpu.memory_space<semaphore_mem>> -> memref<1x!tpu.dma_semaphore, #tpu.memory_space<semaphore_mem>>
    %3 = tpu.memref_squeeze %2 : memref<1x!tpu.dma_semaphore, #tpu.memory_space<semaphore_mem>> -> memref<!tpu.dma_semaphore, #tpu.memory_space<semaphore_mem>>
    tpu.enqueue_dma source(%arg1 : memref<8x32xf32, #tpu.memory_space<any>>) target(%arg3 : memref<8x32xf32, #tpu.memory_space<any>>) target_semaphore(%3 : memref<!tpu.dma_semaphore, #tpu.memory_space<semaphore_mem>>)
    %c0_i32_0 = arith.constant 0 : i32
    %4 = tpu.memref_slice %arg4[%c0_i32_0] : memref<2x!tpu.dma_semaphore, #tpu.memory_space<semaphore_mem>> -> memref<1x!tpu.dma_semaphore, #tpu.memory_space<semaphore_mem>>
    %5 = tpu.memref_squeeze %4 : memref<1x!tpu.dma_semaphore, #tpu.memory_space<semaphore_mem>> -> memref<!tpu.dma_semaphore, #tpu.memory_space<semaphore_mem>>
    tpu.wait_dma2 semaphore(%5 : memref<!tpu.dma_semaphore, #tpu.memory_space<semaphore_mem>>) src(%arg0 : memref<8x32xf32, #tpu.memory_space<any>>) dst(%arg2 : memref<8x32xf32, #tpu.memory_space<any>>)
    %c1_i32_1 = arith.constant 1 : i32
    %6 = tpu.memref_slice %arg4[%c1_i32_1] : memref<2x!tpu.dma_semaphore, #tpu.memory_space<semaphore_mem>> -> memref<1x!tpu.dma_semaphore, #tpu.memory_space<semaphore_mem>>
    %7 = tpu.memref_squeeze %6 : memref<1x!tpu.dma_semaphore, #tpu.memory_space<semaphore_mem>> -> memref<!tpu.dma_semaphore, #tpu.memory_space<semaphore_mem>>
    tpu.wait_dma2 semaphore(%7 : memref<!tpu.dma_semaphore, #tpu.memory_space<semaphore_mem>>) src(%arg1 : memref<8x32xf32, #tpu.memory_space<any>>) dst(%arg3 : memref<8x32xf32, #tpu.memory_space<any>>)
    return
  }
}

</mosaic_0001>

<llo_original>
// kernel: tpu_custom_call.1
$region0: #{tpu_custom_call.1}
  #allocation0 [shape = 'u32[]', space=smem, size = 0x4, offset = 0x4, fixed_abs, tag = 'smem constant byte address 0x4 - core index']
  #allocation1 [shape = 'u32[72,128]{1,0:T(1,128)}', space=vmem, size = 0x9000, scoped, tag = 'internal scratch']
  #allocation2 [shape = 's32[2]{0}', space=sflag, size = 0x8, scoped, tag = 'scratch operand']
  #allocation3 [shape = 's32[]', space=sflag, size = 0x4, offset = 0, fixed_abs, tag = 'sflag constant byte address 0x0 - dummy sync flag']
  #allocation4 [shape = 'u32[0]{0}', space=smem, size = 0, offset = 0, fixed_abs, tag = 'smem constant byte address 0x0 - null']
  #allocation5 [shape = 's32[]', space=sflag, size = 0x4, offset = 0, fixed_abs, tag = 'sflag constant byte address 0x0 - dummy sync flag']
  #allocation6 [shape = 'u32[0]{0}', space=smem, size = 0, offset = 0, fixed_abs, tag = 'smem constant byte address 0x0 - null']
  %s0 = inlined_call_operand.hbm [shape: f32[8,32], index: 0, kind: input, shape index: {}]
  %s1 = inlined_call_operand.hbm [shape: f32[8,32], index: 1, kind: input, shape index: {}]
  %s2 = inlined_call_operand.hbm [shape: f32[8,32], index: 2, kind: output, shape index: {0}]
  %s3 = inlined_call_operand.hbm [shape: f32[8,32], index: 3, kind: output, shape index: {1}]
  %4 = xla_tuple %s2, %s3
  %s5 = sld [smem:[#allocation0]]
  $region2: #{tpu_custom_call.1} parent=0
    _
  %s7 = ssub.s32 1, %s5
  %s8 = scalar_select 0, %s7, %s5
  %s10 = sshll.u32 1, 14
  %s11 = sxor.u32 4294967295, %s10
  %s13 = sshll.u32 %s0, 4
  %s14 = int_to_ptr.hbm [resolvable:$true] %s13
  %s15 = sshll.u32 %s2, 4
  %s16 = int_to_ptr.hbm [resolvable:$true] %s15
  %19 = dma.general %s14, 128, %s16, [#allocation2], [#allocation3], [#allocation4], 0, 0
  %s20 = scalar_lea.sflag [#allocation2], 1
  %s22 = sshll.u32 1, 14
  %s23 = sxor.u32 4294967295, %s22
  %s25 = sshll.u32 %s1, 4
  %s26 = int_to_ptr.hbm [resolvable:$true] %s25
  %s27 = sshll.u32 %s3, 4
  %s28 = int_to_ptr.hbm [resolvable:$true] %s27
  %31 = dma.general %s26, 128, %s28, %s20, [#allocation5], [#allocation6], 0, 0
  %s32 = smul.u32 8, 1
  %s33 = sshll.u32 %s32, 4
  %34 = dma.done [#allocation2], %s33
  %s35 = sshll.u32 %s32, 4
  %36 = dma.done %s20, %s35
  %37 = vsyncmov [#allocation2]
  %s38 = vpop.sfrf %37
  %p39 = scmp.eq.s32.totalorder %s38, 0
  %p40 = pneg %p39
  %42 = shalt.err (%p40)
  %s43 = scalar_lea.sflag [#allocation2], 1
  %44 = vsyncmov %s43
  %s45 = vpop.sfrf %44
  %p46 = scmp.eq.s32.totalorder %s45, 0
  %p47 = pneg %p46
  %49 = shalt.err (%p47)

</llo_original>
